<compile_context>
chip_gen: v5e
topology: v5e:2x2
jax: 0.10.0
libtpu: 0.0.40
codegen_flags: <defaults>
</compile_context>

<pallas_src>
import math
import functools

import jax
import jax.numpy as jnp
from jax.experimental import pallas as pl
from jax.experimental.pallas import tpu as pltpu


_EARTH_RAD_KM = 6371.0
_DEG2RAD = math.pi / 180.0

_LANES = 128
_SUBLANES = 8
_MAX_TILE_ROWS = 1024  # (1024, 128) f32 = 512 KiB per array tile


def _asin_unit(x):
    """arcsin(x) for x in [0, 1], Abramowitz & Stegun 4.4.46.

    Only used as a fallback when max_dist is so large that the short odd
    series below would be inaccurate near the clamp boundary.  Note: has
    ~2e-7 rad f32 cancellation error at small x (~2-3 m), acceptable only for
    multi-thousand-km clamps.
    """
    p = jnp.float32(-0.0012624911)
    for c in (0.0066700901, -0.0170881256, 0.0308918810, -0.0501743046,
              0.0889789874, -0.2145988016, 1.5707963050):
        p = p * x + jnp.float32(c)
    return jnp.float32(math.pi / 2) - jnp.sqrt(jnp.maximum(1.0 - x, 0.0)) * p


def _asin_small(x):
    """arcsin(x) odd series; exact to f32 rounding for x <~ 0.12."""
    x2 = x * x
    poly = (jnp.float32(1.0)
            + x2 * (jnp.float32(1.0 / 6.0)
                    + x2 * (jnp.float32(3.0 / 40.0)
                            + x2 * jnp.float32(15.0 / 336.0))))
    return x * poly


def _local_dist_kernel(lat1_ref, lon1_ref, lat2_ref, lon2_ref, out_ref,
                       *, max_dist, use_small_asin):
    # Cast after the tile is in VMEM (free VPU filler; HBM carries native dtype).
    lat1 = lat1_ref[...].astype(jnp.float32)
    lon1 = lon1_ref[...].astype(jnp.float32)
    lat2 = lat2_ref[...].astype(jnp.float32)
    lon2 = lon2_ref[...].astype(jnp.float32)

    half_rad = jnp.float32(0.5 * _DEG2RAD)
    deg2rad = jnp.float32(_DEG2RAD)

    # (x2 - x1) * pi/180 * 0.5 folded into one multiply.
    sin_dlat = jnp.sin((lat2 - lat1) * half_rad)
    sin_dlon = jnp.sin((lon2 - lon1) * half_rad)
    sd2 = sin_dlat * sin_dlat

    # cos(lat1)*cos(lat2) = 0.5*(cos(lat1-lat2) + cos(lat1+lat2))
    #                     = 0.5*(1 + cos(lat1+lat2)) - sin^2(dlat/2)
    # -> only 3 transcendentals total, and no 1-cos cancellation on the
    #    dominant sin^2 terms.
    cc = (jnp.float32(0.5) * (jnp.float32(1.0) + jnp.cos((lat1 + lat2) * deg2rad))
          - sd2)

    a = sd2 + sin_dlon * sin_dlon * cc
    a = jnp.clip(a, 0.0, 1.0)  # numerical guard for sqrt / asin
    x = jnp.sqrt(a)

    if use_small_asin:
        asin_x = _asin_small(x)   # exact in the un-clamped range; monotone above it
    else:
        asin_x = _asin_unit(x)

    # 2 * R_earth folded into one scalar.
    dist = jnp.float32(2.0 * _EARTH_RAD_KM) * asin_x

    # output[output >= max_dist] = max_dist  ==  min(output, max_dist)
    out_ref[...] = jnp.minimum(dist, jnp.float32(max_dist))


def _ceil_to(x, m):
    return -(-x // m) * m


def local_dist(lat1, lon1, lat2, lon2, max_dist=100.0):
    """Pallas equivalent of LocalDist.forward. Inputs (B, S) -> (B, S, 1) f32."""
    assert lat1.shape == lon1.shape == lat2.shape == lon2.shape
    B, S = lat1.shape
    n = B * S

    # Lane-dense view: flatten to (rows, 128).  Only pad when the shape does
    # not tile cleanly (the common aligned case is a free metadata reshape —
    # no extra HBM pass, and no wrapper-side upcast: kernel casts in VMEM).
    rows = pl.cdiv(n, _LANES)
    if rows <= _SUBLANES:
        # Single full-extent block (block_shape == array dims is always legal).
        tile_r = rows
    else:
        # Aim for >= ~4 grid steps: DMA/compute overlap everywhere, and on v7x
        # lets dimension_semantics=("parallel",) shard across the 2 TCs.
        tile_r = min(_MAX_TILE_ROWS,
                     max(_SUBLANES, _ceil_to(pl.cdiv(rows, 4), _SUBLANES)))
    rows_padded = _ceil_to(rows, tile_r)
    total = rows_padded * _LANES

    def prep(x):
        x = x.reshape(-1)              # keep native dtype; cast happens in-kernel
        if total != n:
            # zero padding is safe: haversine(0,0,0,0) = 0, discarded below
            x = jnp.pad(x, (0, total - n))
        return x.reshape(rows_padded, _LANES)

    args = [prep(a) for a in (lat1, lon1, lat2, lon2)]

    grid = (rows_padded // tile_r,)
    in_specs = [pl.BlockSpec((tile_r, _LANES), lambda i: (i, 0))
                for _ in range(4)]
    out_spec = pl.BlockSpec((tile_r, _LANES), lambda i: (i, 0))

    # Short asin series is valid while the clamp keeps sqrt(a) small; for the
    # default max_dist=100 km this is the accurate path.
    use_small_asin = float(max_dist) <= 1500.0

    in_bytes = sum(a.dtype.itemsize for a in args)
    cost = pl.CostEstimate(
        flops=30 * total,
        transcendentals=4 * total,             # 2 sin + 1 cos + 1 sqrt per elem
        bytes_accessed=total * (in_bytes + 4),  # 4 inputs (native dtype) + f32 out
    )

    out = pl.pallas_call(
        functools.partial(_local_dist_kernel,
                          max_dist=float(max_dist),
                          use_small_asin=use_small_asin),
        out_shape=jax.ShapeDtypeStruct((rows_padded, _LANES), jnp.float32),
        grid=grid,
        in_specs=in_specs,
        out_specs=out_spec,
        compiler_params=pltpu.CompilerParams(
            dimension_semantics=("parallel",),
        ),
        cost_estimate=cost,
    )(*args)

    # glue: strip padding (only when applied), restore (B, S), unsqueeze(dim=2)
    if total == n:
        out = out.reshape(B, S)
    else:
        out = out.reshape(-1)[:n].reshape(B, S)
    return out[:, :, None]


def _local_dist_ref(lat1, lon1, lat2, lon2, max_dist=100.0):
    """Pure-JAX reference (mirrors the PyTorch forward)."""
    lat1 = lat1.astype(jnp.float32)
    lon1 = lon1.astype(jnp.float32)
    lat2 = lat2.astype(jnp.float32)
    lon2 = lon2.astype(jnp.float32)
    dlat = (lat2 - lat1) * _DEG2RAD
    dlon = (lon2 - lon1) * _DEG2RAD
    l1 = lat1 * _DEG2RAD
    l2 = lat2 * _DEG2RAD
    a = jnp.sin(dlat / 2) ** 2 + jnp.sin(dlon / 2) ** 2 * jnp.cos(l1) * jnp.cos(l2)
    c = 2.0 * jnp.arcsin(jnp.sqrt(a))
    out = _EARTH_RAD_KM * c
    out = jnp.minimum(out, max_dist)
    return out[:, :, None]


def _run_case(key, B, S):
    k1, k2, k3, k4 = jax.random.split(key, 4)
    # Base coordinates around (40N, -74E) with perturbations so that some
    # pairs are < 100 km apart and some exceed the clamp.
    lat1 = 40.0 + jax.random.uniform(k1, (B, S), jnp.float32, -1.0, 1.0)
    lon1 = -74.0 + jax.random.uniform(k2, (B, S), jnp.float32, -1.0, 1.0)
    lat2 = lat1 + jax.random.uniform(k3, (B, S), jnp.float32, -2.0, 2.0)
    lon2 = lon1 + jax.random.uniform(k4, (B, S), jnp.float32, -2.0, 2.0)

    out = local_dist(lat1, lon1, lat2, lon2, max_dist=100.0)
    out = jax.block_until_ready(out)
    ref = _local_dist_ref(lat1, lon1, lat2, lon2, max_dist=100.0)

    assert out.shape == (B, S, 1), out.shape
    assert out.dtype == jnp.float32, out.dtype
    assert jnp.allclose(out, ref, rtol=1e-4, atol=1e-3), (
        float(jnp.max(jnp.abs(out - ref))))


if __name__ == "__main__":
    key = jax.random.PRNGKey(0)
    k_a, k_b = jax.random.split(key)

    # Small shapes consistent with the module: batch=2, seq=128 points.
    _run_case(k_a, B=2, S=128)
    # Ragged shape to exercise the lane-padding path.
    _run_case(k_b, B=3, S=50)

    print("KERNEL_OK")
</pallas_src>

<mosaic_0001>
module attributes {stable_mosaic.version = 11 : i64} {
  func.func @_local_dist_kernel(%arg0: i32, %arg1: memref<2x128xf32, #tpu.memory_space<vmem>>, %arg2: memref<2x128xf32, #tpu.memory_space<vmem>>, %arg3: memref<2x128xf32, #tpu.memory_space<vmem>>, %arg4: memref<2x128xf32, #tpu.memory_space<vmem>>, %arg5: memref<2x128xf32, #tpu.memory_space<vmem>>) attributes {dimension_semantics = [#tpu.dimension_semantics<parallel>], iteration_bounds = array<i64: 1>, scalar_prefetch = 0 : i64, scratch_operands = 0 : i64, tpu.core_type = #tpu.core_type<tc>, window_params = [{transform_indices = @transform_0, window_bounds = array<i64: 2, 128>}, {transform_indices = @transform_1, window_bounds = array<i64: 2, 128>}, {transform_indices = @transform_2, window_bounds = array<i64: 2, 128>}, {transform_indices = @transform_3, window_bounds = array<i64: 2, 128>}, {transform_indices = @transform_4, window_bounds = array<i64: 2, 128>}]} {
    %c0 = arith.constant 0 : index
    %c0_0 = arith.constant 0 : index
    %0 = vector.load %arg1[%c0, %c0_0] : memref<2x128xf32, #tpu.memory_space<vmem>>, vector<2x128xf32>
    %c0_1 = arith.constant 0 : index
    %c0_2 = arith.constant 0 : index
    %1 = vector.load %arg2[%c0_1, %c0_2] : memref<2x128xf32, #tpu.memory_space<vmem>>, vector<2x128xf32>
    %c0_3 = arith.constant 0 : index
    %c0_4 = arith.constant 0 : index
    %2 = vector.load %arg3[%c0_3, %c0_4] : memref<2x128xf32, #tpu.memory_space<vmem>>, vector<2x128xf32>
    %c0_5 = arith.constant 0 : index
    %c0_6 = arith.constant 0 : index
    %3 = vector.load %arg4[%c0_5, %c0_6] : memref<2x128xf32, #tpu.memory_space<vmem>>, vector<2x128xf32>
    %4 = arith.subf %2, %0 : vector<2x128xf32>
    %cst = arith.constant 0.00872664619 : f32
    %5 = vector.broadcast %cst : f32 to vector<2x128xf32>
    %6 = arith.mulf %4, %5 : vector<2x128xf32>
    %7 = math.sin %6 : vector<2x128xf32>
    %8 = arith.subf %3, %1 : vector<2x128xf32>
    %cst_7 = arith.constant 0.00872664619 : f32
    %9 = vector.broadcast %cst_7 : f32 to vector<2x128xf32>
    %10 = arith.mulf %8, %9 : vector<2x128xf32>
    %11 = math.sin %10 : vector<2x128xf32>
    %12 = arith.mulf %7, %7 : vector<2x128xf32>
    %13 = arith.addf %0, %2 : vector<2x128xf32>
    %cst_8 = arith.constant 0.0174532924 : f32
    %14 = vector.broadcast %cst_8 : f32 to vector<2x128xf32>
    %15 = arith.mulf %13, %14 : vector<2x128xf32>
    %16 = math.cos %15 : vector<2x128xf32>
    %cst_9 = arith.constant 1.000000e+00 : f32
    %17 = vector.broadcast %cst_9 : f32 to vector<2x128xf32>
    %18 = arith.addf %17, %16 : vector<2x128xf32>
    %cst_10 = arith.constant 5.000000e-01 : f32
    %19 = vector.broadcast %cst_10 : f32 to vector<2x128xf32>
    %20 = arith.mulf %19, %18 : vector<2x128xf32>
    %21 = arith.subf %20, %12 : vector<2x128xf32>
    %22 = arith.mulf %11, %11 : vector<2x128xf32>
    %23 = arith.mulf %22, %21 : vector<2x128xf32>
    %24 = arith.addf %12, %23 : vector<2x128xf32>
    %cst_11 = arith.constant 0.000000e+00 : f32
    %cst_12 = arith.constant 1.000000e+00 : f32
    %25 = vector.broadcast %cst_11 : f32 to vector<2x128xf32>
    %26 = arith.maximumf %25, %24 : vector<2x128xf32>
    %27 = vector.broadcast %cst_12 : f32 to vector<2x128xf32>
    %28 = arith.minimumf %27, %26 : vector<2x128xf32>
    %29 = math.sqrt %28 : vector<2x128xf32>
    %30 = arith.mulf %29, %29 : vector<2x128xf32>
    %cst_13 = arith.constant 0.0446428582 : f32
    %31 = vector.broadcast %cst_13 : f32 to vector<2x128xf32>
    %32 = arith.mulf %30, %31 : vector<2x128xf32>
    %cst_14 = arith.constant 7.500000e-02 : f32
    %33 = vector.broadcast %cst_14 : f32 to vector<2x128xf32>
    %34 = arith.addf %33, %32 : vector<2x128xf32>
    %35 = arith.mulf %30, %34 : vector<2x128xf32>
    %cst_15 = arith.constant 0.166666672 : f32
    %36 = vector.broadcast %cst_15 : f32 to vector<2x128xf32>
    %37 = arith.addf %36, %35 : vector<2x128xf32>
    %38 = arith.mulf %30, %37 : vector<2x128xf32>
    %cst_16 = arith.constant 1.000000e+00 : f32
    %39 = vector.broadcast %cst_16 : f32 to vector<2x128xf32>
    %40 = arith.addf %39, %38 : vector<2x128xf32>
    %41 = arith.mulf %29, %40 : vector<2x128xf32>
    %cst_17 = arith.constant 1.274200e+04 : f32
    %42 = vector.broadcast %cst_17 : f32 to vector<2x128xf32>
    %43 = arith.mulf %42, %41 : vector<2x128xf32>
    %cst_18 = arith.constant 1.000000e+02 : f32
    %44 = vector.broadcast %cst_18 : f32 to vector<2x128xf32>
    %45 = arith.minimumf %43, %44 : vector<2x128xf32>
    %c0_19 = arith.constant 0 : index
    %c0_20 = arith.constant 0 : index
    %46 = vector.load %arg5[%c0_19, %c0_20] : memref<2x128xf32, #tpu.memory_space<vmem>>, vector<2x128xf32>
    tpu.vector_store %arg5[%c0_19, %c0_20], %45 {strides = array<i32>} : memref<2x128xf32, #tpu.memory_space<vmem>>, vector<2x128xf32>,
    return
  }
  func.func @transform_0(%arg0: i32) -> (i32, i32) {
    %c0_i32 = arith.constant 0 : i32
    %c0_i32_0 = arith.constant 0 : i32
    return %arg0, %c0_i32 : i32, i32
  }
  func.func @transform_1(%arg0: i32) -> (i32, i32) {
    %c0_i32 = arith.constant 0 : i32
    %c0_i32_0 = arith.constant 0 : i32
    return %arg0, %c0_i32 : i32, i32
  }
  func.func @transform_2(%arg0: i32) -> (i32, i32) {
    %c0_i32 = arith.constant 0 : i32
    %c0_i32_0 = arith.constant 0 : i32
    return %arg0, %c0_i32 : i32, i32
  }
  func.func @transform_3(%arg0: i32) -> (i32, i32) {
    %c0_i32 = arith.constant 0 : i32
    %c0_i32_0 = arith.constant 0 : i32
    return %arg0, %c0_i32 : i32, i32
  }
  func.func @transform_4(%arg0: i32) -> (i32, i32) {
    %c0_i32 = arith.constant 0 : i32
    %c0_i32_0 = arith.constant 0 : i32
    return %arg0, %c0_i32 : i32, i32
  }
}

</mosaic_0001>

<llo_original>
// kernel: tpu_custom_call.1
$region0: #{tpu_custom_call.1}
  #allocation0 [shape = 'u32[]', space=smem, size = 0x4, offset = 0x4, fixed_abs, tag = 'smem constant byte address 0x4 - core index']
  #allocation1 [shape = 'u32[72,128]{1,0:T(1,128)}', space=vmem, size = 0x9000, scoped, tag = 'internal scratch']
  %s0 = inlined_call_operand.hbm [shape: f32[2,128], index: 0, kind: input, shape index: {}]
  %s1 = inlined_call_operand.hbm [shape: f32[2,128], index: 1, kind: input, shape index: {}]
  %s2 = inlined_call_operand.hbm [shape: f32[2,128], index: 2, kind: input, shape index: {}]
  %s3 = inlined_call_operand.vmem [shape: f32[2,128], index: 3, kind: input, shape index: {}]
  %s4 = inlined_call_operand.hbm [shape: f32[2,128], index: 4, kind: output, shape index: {}]
  %s5 = sld [smem:[#allocation0]]
  $region38: #{tpu_custom_call.1} parent=0
    _
  %s7 = ssub.s32 1, %s5
  %s8 = scalar_select 0, %s7, %s5
  $region1: #{tpu_custom_call.1} parent=0
    #allocation2 [shape = 'u8[1024]{0}', space=vmem, size = 0x400, scoped, tag = 'input window, operand 0, single buffered']
    #allocation3 [shape = 's32[1]{0}', space=sflag, size = 0x4, scoped, tag = 'scoped memory for tpu_custom_call.1']
    #allocation4 [shape = 's32[1]{0}', space=sflag, size = 0x4, scoped, tag = 'scoped memory for tpu_custom_call.1']
    #allocation5 [shape = 'u8[1024]{0}', space=vmem, size = 0x400, scoped, tag = 'input window, operand 1, single buffered']
    #allocation6 [shape = 's32[1]{0}', space=sflag, size = 0x4, scoped, tag = 'scoped memory for tpu_custom_call.1']
    #allocation7 [shape = 'u8[1024]{0}', space=vmem, size = 0x400, scoped, tag = 'input window, operand 2, single buffered']
    #allocation8 [shape = 'u8[1024]{0}', space=vmem, size = 0x400, scoped, tag = 'output window, operand 0, single buffered']
    %9 = vsyncpa [#allocation3], 0
    %10 = vsyncpa [#allocation6], 0
    %11 = vsyncpa [#allocation4], 0
    // Predicated region
    $region2: #{tpu_custom_call.1} parent=1 // pred_check
      _
    $region3: #{tpu_custom_call.1} parent=1 // pred_check_branch
      %13 = sbr.rel (0) target = $region5
    $region4: #{tpu_custom_call.1} parent=1 // pred_region
      %15 = vsyncadd [#allocation3], 0
      %s17 = sshll.u32 %s0, 4
      %s18 = int_to_ptr.hbm [resolvable:$true] %s17
      %s19 = sshll.u32 [#allocation2], 4
      %s20 = int_to_ptr.vmem [resolvable:$true] %s19
      %22 = dma.hbm_to_vmem [thread:$0]  %s18, 32, %s20, [#allocation3]
    $region5: #{tpu_custom_call.1} parent=1 // pred_fallthru
      _
    // Predicated region
    $region6: #{tpu_custom_call.1} parent=1 // pred_check
      _
    $region7: #{tpu_custom_call.1} parent=1 // pred_check_branch
      %24 = sbr.rel (0) target = $region9
    $region8: #{tpu_custom_call.1} parent=1 // pred_region
      %26 = vsyncadd [#allocation6], 0
      %s28 = sshll.u32 %s1, 4
      %s29 = int_to_ptr.hbm [resolvable:$true] %s28
      %s30 = sshll.u32 [#allocation5], 4
      %s31 = int_to_ptr.vmem [resolvable:$true] %s30
      %33 = dma.hbm_to_vmem [thread:$0]  %s29, 32, %s31, [#allocation6]
    $region9: #{tpu_custom_call.1} parent=1 // pred_fallthru
      _
    // Predicated region
    $region10: #{tpu_custom_call.1} parent=1 // pred_check
      _
    $region11: #{tpu_custom_call.1} parent=1 // pred_check_branch
      %35 = sbr.rel (0) target = $region13
    $region12: #{tpu_custom_call.1} parent=1 // pred_region
      %37 = vsyncadd [#allocation6], 0
      %s39 = sshll.u32 %s2, 4
      %s40 = int_to_ptr.hbm [resolvable:$true] %s39
      %s41 = sshll.u32 [#allocation7], 4
      %s42 = int_to_ptr.vmem [resolvable:$true] %s41
      %44 = dma.hbm_to_vmem [thread:$0]  %s40, 32, %s42, [#allocation6]
    $region13: #{tpu_custom_call.1} parent=1 // pred_fallthru
      _
    // Predicated region
    $region14: #{tpu_custom_call.1} parent=1 // pred_check
      _
    $region15: #{tpu_custom_call.1} parent=1 // pred_check_branch
      %46 = sbr.rel (0) target = $region17
    $region16: #{tpu_custom_call.1} parent=1 // pred_region
      _
    $region17: #{tpu_custom_call.1} parent=1 // pred_fallthru
      _
    // Predicated region
    $region18: #{tpu_custom_call.1} parent=1 // pred_check
      _
    $region19: #{tpu_custom_call.1} parent=1 // pred_check_branch
      %48 = sbr.rel (0) target = $region21
    $region20: #{tpu_custom_call.1} parent=1 // pred_region
      %50 = dma.done [#allocation3], 32
    $region21: #{tpu_custom_call.1} parent=1 // pred_fallthru
      _
    // Predicated region
    $region22: #{tpu_custom_call.1} parent=1 // pred_check
      _
    $region23: #{tpu_custom_call.1} parent=1 // pred_check_branch
      %52 = sbr.rel (0) target = $region25
    $region24: #{tpu_custom_call.1} parent=1 // pred_region
      %54 = dma.done [#allocation6], 32
    $region25: #{tpu_custom_call.1} parent=1 // pred_fallthru
      _
    // Predicated region
    $region26: #{tpu_custom_call.1} parent=1 // pred_check
      _
    $region27: #{tpu_custom_call.1} parent=1 // pred_check_branch
      %56 = sbr.rel (0) target = $region29
    $region28: #{tpu_custom_call.1} parent=1 // pred_region
      %58 = dma.done [#allocation6], 32
    $region29: #{tpu_custom_call.1} parent=1 // pred_fallthru
      _
    %v59 = vld [vmem:[#allocation2] sm:$0x3]
    %v60 = vld [vmem:[#allocation5] sm:$0x3]
    %v61 = vld [vmem:[#allocation7] sm:$0x3]
    %v62 = vld [vmem:[%s3] sm:$0x3]
    %v63 = vsub.f32 %v61, %v59
    %v64 = vmul.f32 %v63, 0.008726646
    %v65 = vand.u32 2147483647, %v64
    %vm66 = vcmp.le.f32.partialorder %v65, 0.7853982
    %vm67 = vcmp.lt.s32.totalorder %v64, 0
    %v68 = vand.u32 %v64, 2139095040
    %v69 = vshrl.u32 %v68, 23
    %v70 = vsub.s32 %v69, 127
    %v71 = vand.u32 2147483647, %v64
    %v72 = vand.u32 %v71, 8388607
    %v73 = vor.u32 %v72, 8388608
    %v74 = vsub.s32 0, %v73
    %v75 = vadd.s32 %v70, 1
    %vm76 = vcmp.gt.s32.totalorder %v75, 0
    %v77 = vsel %vm76, %v75, 0
    %v78 = vshrl.u32 %v77, 5
    %v79 = vand.u32 %v77, 31
    %v80 = vsub.s32 32, %v79
    %v81 = vshrl.u32 683565275, %v80
    %v82 = vshll.u32 683565275, %v79
    %v83 = vshrl.u32 2475754826, %v80
    %v84 = vor.u32 %v82, %v83
    %v85 = vshll.u32 2475754826, %v79
    %v86 = vshrl.u32 2131351028, %v80
    %v87 = vor.u32 %v85, %v86
    %v88 = vshll.u32 2131351028, %v79
    %v89 = vshrl.u32 2102212464, %v80
    %v90 = vor.u32 %v88, %v89
    %v91 = vshll.u32 2102212464, %v79
    %v92 = vshrl.u32 920167782, %v80
    %v93 = vor.u32 %v91, %v92
    %v94 = vshll.u32 920167782, %v79
    %v95 = vshrl.u32 1326507024, %v80
    %v96 = vor.u32 %v94, %v95
    %vm97 = vcmp.lt.s32.totalorder %v78, 1
    %vm98 = vcmp.lt.s32.totalorder %v78, 2
    %vm99 = vcmp.lt.s32.totalorder %v78, 3
    %vm100 = vcmp.lt.s32.totalorder %v78, 4
    %v101 = vsel %vm97, %v81, %v84
    %v102 = vsel %vm100, %v90, 2102212464
    %v103 = vsel %vm99, %v87, %v102
    %v104 = vsel %vm98, %v101, %v103
    %v105 = vsel %vm97, %v84, %v87
    %v106 = vsel %vm100, %v93, 920167782
    %v107 = vsel %vm99, %v90, %v106
    %v108 = vsel %vm98, %v105, %v107
    %v109 = vsel %vm97, %v87, %v90
    %v110 = vsel %vm100, %v96, 1326507024
    %v111 = vsel %vm99, %v93, %v110
    %v112 = vsel %vm98, %v109, %v111
    %v113 = vshll.u32 %v73, 8
    %v114 = vand.u32 %v113, 65535
    %v115 = vshrl.u32 %v113, 16
    %v116 = vand.u32 %v112, 65535
    %v117 = vshrl.u32 %v112, 16
    %v118 = vmul.u32 %v114, %v116
    %v119 = vmul.u32 %v114, %v117
    %v120 = vmul.u32 %v115, %v116
    %v121 = vmul.u32 %v115, %v117
    %v122 = vshll.u32 %v119, 16
    %v123 = vshrl.u32 %v119, 16
    %v124 = vshll.u32 %v120, 16
    %v125 = vshrl.u32 %v120, 16
    %vm126 = vc.u32 %v118, %v122
    %v127 = vsel %vm126, 1, 0
    %v128 = vadd.s32 %v118, %v122
    %v129 = vadd.s32 %v121, %v127
    %vm130 = vc.u32 %v128, %v124
    %v131 = vsel %vm130, 1, 0
    %v132 = vadd.s32 %v128, %v124
    %v133 = vadd.s32 %v129, %v131
    %v134 = vadd.s32 %v133, %v123
    %v135 = vadd.s32 %v134, %v125
    %v136 = vand.u32 %v113, 65535
    %v137 = vshrl.u32 %v113, 16
    %v138 = vand.u32 %v108, 65535
    %v139 = vshrl.u32 %v108, 16
    %v140 = vmul.u32 %v136, %v138
    %v141 = vmul.u32 %v136, %v139
    %v142 = vmul.u32 %v137, %v138
    %v143 = vmul.u32 %v137, %v139
    %v144 = vshll.u32 %v141, 16
    %v145 = vshrl.u32 %v141, 16
    %v146 = vshll.u32 %v142, 16
    %v147 = vshrl.u32 %v142, 16
    %vm148 = vc.u32 %v140, %v144
    %v149 = vsel %vm148, 1, 0
    %v150 = vadd.s32 %v140, %v144
    %v151 = vadd.s32 %v143, %v149
    %vm152 = vc.u32 %v150, %v146
    %v153 = vsel %vm152, 1, 0
    %v154 = vadd.s32 %v150, %v146
    %v155 = vadd.s32 %v151, %v153
    %v156 = vadd.s32 %v155, %v145
    %v157 = vadd.s32 %v156, %v147
    %v158 = vmul.u32 %v113, %v104
    %v159 = vadd.s32 %v135, %v154
    %vm160 = vc.u32 %v135, %v154
    %v161 = vadd.s32 %v157, 1
    %v162 = vsel %vm160, %v161, %v157
    %v163 = vadd.s32 %v158, %v162
    %v164 = vadd.s32 %v163, 536870912
    %v165 = vshrl.u32 %v164, 30
    %v166 = vshll.u32 %v165, 30
    %v167 = vsub.s32 %v163, %v166
    %vm168 = vcmp.lt.s32.totalorder %v167, 0
    %v169 = vsub.s32 0, %v167
    %v170 = vsel %vm168, %v169, %v167
    %v171 = vclz %v170
    %v172 = vsub.s32 %v171, 2
    %vm173 = vcmp.gt.s32.totalorder 0, %v172
    %v174 = vsel %vm173, 0, %v172
    %v175 = vsub.s32 32, %v174
    %v176 = vshll.u32 %v167, %v174
    %v177 = vshrl.u32 %v159, %v175
    %v178 = vor.u32 %v176, %v177
    %v179 = vsub.s32 4294967266, %v174
    %v180 = vadd.s32 %v179, 127
    %v181 = vshll.u32 %v180, 23
    %v182 = vor.u32 4788187, %v181
    %v183 = vand.u32 2147483647, %v182
    %v185 = vcvt.s32.f32 %v178
    %v186 = vmul.f32 %v185, %v183
    %v187 = vxor.u32 %v186, 2147483648
    %v188 = vsel %vm67, %v187, %v186
    %v189 = vsub.s32 4, %v165
    %v190 = vsel %vm67, %v189, %v165
    %v191 = vsel %vm66, %v64, %v188
    %v192 = vsel %vm66, 0, %v190
    %v193 = vmul.f32 %v191, %v191
    %v194 = vmul.f32 %v193, -0.001358992
    %v195 = vadd.f32 %v194, 0.041655596
    %v196 = vmul.f32 %v193, %v195
    %v197 = vadd.f32 %v196, -0.4999988
    %v198 = vmul.f32 %v193, %v197
    %v199 = vadd.f32 1.0, %v198
    %v200 = vmul.f32 %v191, %v191
    %v201 = vmul.f32 %v200, -0.00019511016
    %v202 = vadd.f32 %v201, 0.008332121
    %v203 = vmul.f32 %v200, %v202
    %v204 = vadd.f32 %v203, -0.16666654
    %v205 = vmul.f32 %v200, %v204
    %v206 = vadd.f32 %v205, 1.0
    %v207 = vmul.f32 %v206, %v191
    %vm208 = vweird.f32 %v64
    %v209 = vadd.s32 %v192, 3
    %v210 = vand.u32 %v209, 3
    %vm211 = vcmp.lt.s32.totalorder %v210, 2
    %vm212 = vcmp.eq.s32.totalorder %v210, 0
    %v213 = vxor.u32 %v207, 2147483648
    %v214 = vsel %vm212, %v199, %v213
    %vm215 = vcmp.eq.s32.totalorder %v210, 2
    %v216 = vxor.u32 %v199, 2147483648
    %v217 = vsel %vm215, %v216, %v207
    %v218 = vsel %vm211, %v214, %v217
    %v219 = vsel %vm208, nan, %v218
    %v220 = vsub.f32 %v62, %v60
    %v221 = vmul.f32 %v220, 0.008726646
    %v222 = vand.u32 2147483647, %v221
    %vm223 = vcmp.le.f32.partialorder %v222, 0.7853982
    %vm224 = vcmp.lt.s32.totalorder %v221, 0
    %v225 = vand.u32 %v221, 2139095040
    %v226 = vshrl.u32 %v225, 23
    %v227 = vsub.s32 %v226, 127
    %v228 = vand.u32 2147483647, %v221
    %v229 = vand.u32 %v228, 8388607
    %v230 = vor.u32 %v229, 8388608
    %v231 = vsub.s32 0, %v230
    %v232 = vadd.s32 %v227, 1
    %vm233 = vcmp.gt.s32.totalorder %v232, 0
    %v234 = vsel %vm233, %v232, 0
    %v235 = vshrl.u32 %v234, 5
    %v236 = vand.u32 %v234, 31
    %v237 = vsub.s32 32, %v236
    %v238 = vshrl.u32 683565275, %v237
    %v239 = vshll.u32 683565275, %v236
    %v240 = vshrl.u32 2475754826, %v237
    %v241 = vor.u32 %v239, %v240
    %v242 = vshll.u32 2475754826, %v236
    %v243 = vshrl.u32 2131351028, %v237
    %v244 = vor.u32 %v242, %v243
    %v245 = vshll.u32 2131351028, %v236
    %v246 = vshrl.u32 2102212464, %v237
    %v247 = vor.u32 %v245, %v246
    %v248 = vshll.u32 2102212464, %v236
    %v249 = vshrl.u32 920167782, %v237
    %v250 = vor.u32 %v248, %v249
    %v251 = vshll.u32 920167782, %v236
    %v252 = vshrl.u32 1326507024, %v237
    %v253 = vor.u32 %v251, %v252
    %vm254 = vcmp.lt.s32.totalorder %v235, 1
    %vm255 = vcmp.lt.s32.totalorder %v235, 2
    %vm256 = vcmp.lt.s32.totalorder %v235, 3
    %vm257 = vcmp.lt.s32.totalorder %v235, 4
    %v258 = vsel %vm254, %v238, %v241
    %v259 = vsel %vm257, %v247, 2102212464
    %v260 = vsel %vm256, %v244, %v259
    %v261 = vsel %vm255, %v258, %v260
    %v262 = vsel %vm254, %v241, %v244
    %v263 = vsel %vm257, %v250, 920167782
    %v264 = vsel %vm256, %v247, %v263
    %v265 = vsel %vm255, %v262, %v264
    %v266 = vsel %vm254, %v244, %v247
    %v267 = vsel %vm257, %v253, 1326507024
    %v268 = vsel %vm256, %v250, %v267
    %v269 = vsel %vm255, %v266, %v268
    %v270 = vshll.u32 %v230, 8
    %v271 = vand.u32 %v270, 65535
    %v272 = vshrl.u32 %v270, 16
    %v273 = vand.u32 %v269, 65535
    %v274 = vshrl.u32 %v269, 16
    %v275 = vmul.u32 %v271, %v273
    %v276 = vmul.u32 %v271, %v274
    %v277 = vmul.u32 %v272, %v273
    %v278 = vmul.u32 %v272, %v274
    %v279 = vshll.u32 %v276, 16
    %v280 = vshrl.u32 %v276, 16
    %v281 = vshll.u32 %v277, 16
    %v282 = vshrl.u32 %v277, 16
    %vm283 = vc.u32 %v275, %v279
    %v284 = vsel %vm283, 1, 0
    %v285 = vadd.s32 %v275, %v279
    %v286 = vadd.s32 %v278, %v284
    %vm287 = vc.u32 %v285, %v281
    %v288 = vsel %vm287, 1, 0
    %v289 = vadd.s32 %v285, %v281
    %v290 = vadd.s32 %v286, %v288
    %v291 = vadd.s32 %v290, %v280
    %v292 = vadd.s32 %v291, %v282
    %v293 = vand.u32 %v270, 65535
    %v294 = vshrl.u32 %v270, 16
    %v295 = vand.u32 %v265, 65535
    %v296 = vshrl.u32 %v265, 16
    %v297 = vmul.u32 %v293, %v295
    %v298 = vmul.u32 %v293, %v296
    %v299 = vmul.u32 %v294, %v295
    %v300 = vmul.u32 %v294, %v296
    %v301 = vshll.u32 %v298, 16
    %v302 = vshrl.u32 %v298, 16
    %v303 = vshll.u32 %v299, 16
    %v304 = vshrl.u32 %v299, 16
    %vm305 = vc.u32 %v297, %v301
    %v306 = vsel %vm305, 1, 0
    %v307 = vadd.s32 %v297, %v301
    %v308 = vadd.s32 %v300, %v306
    %vm309 = vc.u32 %v307, %v303
    %v310 = vsel %vm309, 1, 0
    %v311 = vadd.s32 %v307, %v303
    %v312 = vadd.s32 %v308, %v310
    %v313 = vadd.s32 %v312, %v302
    %v314 = vadd.s32 %v313, %v304
    %v315 = vmul.u32 %v270, %v261
    %v316 = vadd.s32 %v292, %v311
    %vm317 = vc.u32 %v292, %v311
    %v318 = vadd.s32 %v314, 1
    %v319 = vsel %vm317, %v318, %v314
    %v320 = vadd.s32 %v315, %v319
    %v321 = vadd.s32 %v320, 536870912
    %v322 = vshrl.u32 %v321, 30
    %v323 = vshll.u32 %v322, 30
    %v324 = vsub.s32 %v320, %v323
    %vm325 = vcmp.lt.s32.totalorder %v324, 0
    %v326 = vsub.s32 0, %v324
    %v327 = vsel %vm325, %v326, %v324
    %v328 = vclz %v327
    %v329 = vsub.s32 %v328, 2
    %vm330 = vcmp.gt.s32.totalorder 0, %v329
    %v331 = vsel %vm330, 0, %v329
    %v332 = vsub.s32 32, %v331
    %v333 = vshll.u32 %v324, %v331
    %v334 = vshrl.u32 %v316, %v332
    %v335 = vor.u32 %v333, %v334
    %v336 = vsub.s32 4294967266, %v331
    %v337 = vadd.s32 %v336, 127
    %v338 = vshll.u32 %v337, 23
    %v339 = vor.u32 4788187, %v338
    %v340 = vand.u32 2147483647, %v339
    %v342 = vcvt.s32.f32 %v335
    %v343 = vmul.f32 %v342, %v340
    %v344 = vxor.u32 %v343, 2147483648
    %v345 = vsel %vm224, %v344, %v343
    %v346 = vsub.s32 4, %v322
    %v347 = vsel %vm224, %v346, %v322
    %v348 = vsel %vm223, %v221, %v345
    %v349 = vsel %vm223, 0, %v347
    %v350 = vmul.f32 %v348, %v348
    %v351 = vmul.f32 %v350, -0.001358992
    %v352 = vadd.f32 %v351, 0.041655596
    %v353 = vmul.f32 %v350, %v352
    %v354 = vadd.f32 %v353, -0.4999988
    %v355 = vmul.f32 %v350, %v354
    %v356 = vadd.f32 1.0, %v355
    %v357 = vmul.f32 %v348, %v348
    %v358 = vmul.f32 %v357, -0.00019511016
    %v359 = vadd.f32 %v358, 0.008332121
    %v360 = vmul.f32 %v357, %v359
    %v361 = vadd.f32 %v360, -0.16666654
    %v362 = vmul.f32 %v357, %v361
    %v363 = vadd.f32 %v362, 1.0
    %v364 = vmul.f32 %v363, %v348
    %vm365 = vweird.f32 %v221
    %v366 = vadd.s32 %v349, 3
    %v367 = vand.u32 %v366, 3
    %vm368 = vcmp.lt.s32.totalorder %v367, 2
    %vm369 = vcmp.eq.s32.totalorder %v367, 0
    %v370 = vxor.u32 %v364, 2147483648
    %v371 = vsel %vm369, %v356, %v370
    %vm372 = vcmp.eq.s32.totalorder %v367, 2
    %v373 = vxor.u32 %v356, 2147483648
    %v374 = vsel %vm372, %v373, %v364
    %v375 = vsel %vm368, %v371, %v374
    %v376 = vsel %vm365, nan, %v375
    %v377 = vmul.f32 %v219, %v219
    %v378 = vadd.f32 %v59, %v61
    %v379 = vmul.f32 %v378, 0.017453292
    %v380 = vand.u32 2147483647, %v379
    %vm381 = vcmp.le.f32.partialorder %v380, 0.7853982
    %vm382 = vcmp.lt.s32.totalorder %v379, 0
    %v383 = vand.u32 %v379, 2139095040
    %v384 = vshrl.u32 %v383, 23
    %v385 = vsub.s32 %v384, 127
    %v386 = vand.u32 2147483647, %v379
    %v387 = vand.u32 %v386, 8388607
    %v388 = vor.u32 %v387, 8388608
    %v389 = vsub.s32 0, %v388
    %v390 = vadd.s32 %v385, 1
    %vm391 = vcmp.gt.s32.totalorder %v390, 0
    %v392 = vsel %vm391, %v390, 0
    %v393 = vshrl.u32 %v392, 5
    %v394 = vand.u32 %v392, 31
    %v395 = vsub.s32 32, %v394
    %v396 = vshrl.u32 683565275, %v395
    %v397 = vshll.u32 683565275, %v394
    %v398 = vshrl.u32 2475754826, %v395
    %v399 = vor.u32 %v397, %v398
    %v400 = vshll.u32 2475754826, %v394
    %v401 = vshrl.u32 2131351028, %v395
    %v402 = vor.u32 %v400, %v401
    %v403 = vshll.u32 2131351028, %v394
    %v404 = vshrl.u32 2102212464, %v395
    %v405 = vor.u32 %v403, %v404
    %v406 = vshll.u32 2102212464, %v394
    %v407 = vshrl.u32 920167782, %v395
    %v408 = vor.u32 %v406, %v407
    %v409 = vshll.u32 920167782, %v394
    %v410 = vshrl.u32 1326507024, %v395
    %v411 = vor.u32 %v409, %v410
    %vm412 = vcmp.lt.s32.totalorder %v393, 1
    %vm413 = vcmp.lt.s32.totalorder %v393, 2
    %vm414 = vcmp.lt.s32.totalorder %v393, 3
    %vm415 = vcmp.lt.s32.totalorder %v393, 4
    %v416 = vsel %vm412, %v396, %v399
    %v417 = vsel %vm415, %v405, 2102212464
    %v418 = vsel %vm414, %v402, %v417
    %v419 = vsel %vm413, %v416, %v418
    %v420 = vsel %vm412, %v399, %v402
    %v421 = vsel %vm415, %v408, 920167782
    %v422 = vsel %vm414, %v405, %v421
    %v423 = vsel %vm413, %v420, %v422
    %v424 = vsel %vm412, %v402, %v405
    %v425 = vsel %vm415, %v411, 1326507024
    %v426 = vsel %vm414, %v408, %v425
    %v427 = vsel %vm413, %v424, %v426
    %v428 = vshll.u32 %v388, 8
    %v429 = vand.u32 %v428, 65535
    %v430 = vshrl.u32 %v428, 16
    %v431 = vand.u32 %v427, 65535
    %v432 = vshrl.u32 %v427, 16
    %v433 = vmul.u32 %v429, %v431
    %v434 = vmul.u32 %v429, %v432
    %v435 = vmul.u32 %v430, %v431
    %v436 = vmul.u32 %v430, %v432
    %v437 = vshll.u32 %v434, 16
    %v438 = vshrl.u32 %v434, 16
    %v439 = vshll.u32 %v435, 16
    %v440 = vshrl.u32 %v435, 16
    %vm441 = vc.u32 %v433, %v437
    %v442 = vsel %vm441, 1, 0
    %v443 = vadd.s32 %v433, %v437
    %v444 = vadd.s32 %v436, %v442
    %vm445 = vc.u32 %v443, %v439
    %v446 = vsel %vm445, 1, 0
    %v447 = vadd.s32 %v443, %v439
    %v448 = vadd.s32 %v444, %v446
    %v449 = vadd.s32 %v448, %v438
    %v450 = vadd.s32 %v449, %v440
    %v451 = vand.u32 %v428, 65535
    %v452 = vshrl.u32 %v428, 16
    %v453 = vand.u32 %v423, 65535
    %v454 = vshrl.u32 %v423, 16
    %v455 = vmul.u32 %v451, %v453
    %v456 = vmul.u32 %v451, %v454
    %v457 = vmul.u32 %v452, %v453
    %v458 = vmul.u32 %v452, %v454
    %v459 = vshll.u32 %v456, 16
    %v460 = vshrl.u32 %v456, 16
    %v461 = vshll.u32 %v457, 16
    %v462 = vshrl.u32 %v457, 16
    %vm463 = vc.u32 %v455, %v459
    %v464 = vsel %vm463, 1, 0
    %v465 = vadd.s32 %v455, %v459
    %v466 = vadd.s32 %v458, %v464
    %vm467 = vc.u32 %v465, %v461
    %v468 = vsel %vm467, 1, 0
    %v469 = vadd.s32 %v465, %v461
    %v470 = vadd.s32 %v466, %v468
    %v471 = vadd.s32 %v470, %v460
    %v472 = vadd.s32 %v471, %v462
    %v473 = vmul.u32 %v428, %v419
    %v474 = vadd.s32 %v450, %v469
    %vm475 = vc.u32 %v450, %v469
    %v476 = vadd.s32 %v472, 1
    %v477 = vsel %vm475, %v476, %v472
    %v478 = vadd.s32 %v473, %v477
    %v479 = vadd.s32 %v478, 536870912
    %v480 = vshrl.u32 %v479, 30
    %v481 = vshll.u32 %v480, 30
    %v482 = vsub.s32 %v478, %v481
    %vm483 = vcmp.lt.s32.totalorder %v482, 0
    %v484 = vsub.s32 0, %v482
    %v485 = vsel %vm483, %v484, %v482
    %v486 = vclz %v485
    %v487 = vsub.s32 %v486, 2
    %vm488 = vcmp.gt.s32.totalorder 0, %v487
    %v489 = vsel %vm488, 0, %v487
    %v490 = vsub.s32 32, %v489
    %v491 = vshll.u32 %v482, %v489
    %v492 = vshrl.u32 %v474, %v490
    %v493 = vor.u32 %v491, %v492
    %v494 = vsub.s32 4294967266, %v489
    %v495 = vadd.s32 %v494, 127
    %v496 = vshll.u32 %v495, 23
    %v497 = vor.u32 4788187, %v496
    %v498 = vand.u32 2147483647, %v497
    %v500 = vcvt.s32.f32 %v493
    %v501 = vmul.f32 %v500, %v498
    %v502 = vxor.u32 %v501, 2147483648
    %v503 = vsel %vm382, %v502, %v501
    %v504 = vsub.s32 4, %v480
    %v505 = vsel %vm382, %v504, %v480
    %v506 = vsel %vm381, %v379, %v503
    %v507 = vsel %vm381, 0, %v505
    %v508 = vmul.f32 %v506, %v506
    %v509 = vmul.f32 %v508, -0.001358992
    %v510 = vadd.f32 %v509, 0.041655596
    %v511 = vmul.f32 %v508, %v510
    %v512 = vadd.f32 %v511, -0.4999988
    %v513 = vmul.f32 %v508, %v512
    %v514 = vadd.f32 1.0, %v513
    %v515 = vmul.f32 %v506, %v506
    %v516 = vmul.f32 %v515, -0.00019511016
    %v517 = vadd.f32 %v516, 0.008332121
    %v518 = vmul.f32 %v515, %v517
    %v519 = vadd.f32 %v518, -0.16666654
    %v520 = vmul.f32 %v515, %v519
    %v521 = vadd.f32 %v520, 1.0
    %v522 = vmul.f32 %v521, %v506
    %vm523 = vweird.f32 %v379
    %v524 = vand.u32 %v507, 3
    %vm525 = vcmp.lt.s32.totalorder %v524, 2
    %vm526 = vcmp.eq.s32.totalorder %v524, 0
    %v527 = vxor.u32 %v522, 2147483648
    %v528 = vsel %vm526, %v514, %v527
    %vm529 = vcmp.eq.s32.totalorder %v524, 2
    %v530 = vxor.u32 %v514, 2147483648
    %v531 = vsel %vm529, %v530, %v522
    %v532 = vsel %vm525, %v528, %v531
    %v533 = vsel %vm523, nan, %v532
    %v534 = vadd.f32 %v533, 1.0
    %v535 = vmul.f32 %v534, 0.5
    %v536 = vsub.f32 %v535, %v377
    %v537 = vmul.f32 %v376, %v376
    %v538 = vmul.f32 %v537, %v536
    %v539 = vadd.f32 %v377, %v538
    %v540 = vmax.f32 %v539, 0.0
    %v541 = vmin.f32 %v540, 1.0
    %v542 = vrsqrt.pop %v541
    %v543 = vmul.f32 %v542, %v541
    %v544 = vmul.f32 %v543, %v542
    %v545 = vmul.f32 0.5, %v544
    %v546 = vsub.f32 1.5, %v545
    %v547 = vmul.f32 %v542, %v546
    %v548 = vmul.f32 %v541, %v547
    %vm549 = vcmp.eq.f32.partialorder %v541, inf
    %v550 = vsel %vm549, %v541, %v548
    %vm551 = vcmp.eq.f32.partialorder %v541, 0.0
    %v552 = vand.u32 %v541, 2147483648
    %v553 = vsel %vm551, %v552, %v550
    %v554 = vmul.f32 %v553, %v553
    %v555 = vmul.f32 %v554, 0.04464286
    %v556 = vadd.f32 %v555, 0.075
    %v557 = vmul.f32 %v554, %v556
    %v558 = vadd.f32 %v557, 0.16666667
    %v559 = vmul.f32 %v554, %v558
    %v560 = vadd.f32 %v559, 1.0
    %v561 = vmul.f32 %v553, %v560
    %v562 = vmul.f32 %v561, 12742.0
    %v563 = vmin.f32 %v562, 100.0
    %564 = vst [vmem:[#allocation8] sm:$0x3] %v563
    // Predicated region
    $region30: #{tpu_custom_call.1} parent=1 // pred_check
      _
    $region31: #{tpu_custom_call.1} parent=1 // pred_check_branch
      %566 = sbr.rel (0) target = $region33
    $region32: #{tpu_custom_call.1} parent=1 // pred_region
      %568 = vsyncadd [#allocation4], 0
      %s570 = sshll.u32 [#allocation8], 4
      %s571 = int_to_ptr.vmem [resolvable:$true] %s570
      %s572 = sshll.u32 %s4, 4
      %s573 = int_to_ptr.hbm [resolvable:$true] %s572
      %575 = dma.vmem_to_hbm [thread:$0]  %s571, 32, %s573, [#allocation4]
    $region33: #{tpu_custom_call.1} parent=1 // pred_fallthru
      _
    // Predicated region
    $region34: #{tpu_custom_call.1} parent=1 // pred_check
      _
    $region35: #{tpu_custom_call.1} parent=1 // pred_check_branch
      %577 = sbr.rel (0) target = $region37
    $region36: #{tpu_custom_call.1} parent=1 // pred_region
      %579 = dma.done [#allocation4], 32
    $region37: #{tpu_custom_call.1} parent=1 // pred_fallthru
      _
    %580 = vsyncpa [#allocation3], 1
    %581 = vsyncpa [#allocation6], 1
    %582 = vsyncpa [#allocation4], 1

</llo_original>
